<compile_context>
chip_gen: v5e
topology: v5e:2x2
jax: 0.10.0
libtpu: 0.0.40
codegen_flags: <defaults>
</compile_context>

<pallas_src>
import functools

import jax
import jax.numpy as jnp
from jax import lax
from jax.experimental import pallas as pl
from jax.experimental.pallas import tpu as pltpu


_LANES = 128                   # vreg lane width
_SUBLANES = 8                  # vreg sublane count
_TARGET_TILE_BYTES = 4 << 20   # per x tile; double-buffered ~8 MiB -> fits the
                               # 16 MiB (v5e) / 32 MiB (v6e, v7x) scoped-VMEM defaults
_MAX_TK = 8192                 # cap on the D tile (bounds VMEM and in-kernel unroll)
_MAX_TM = 32768                # cap on the row tile (keeps (tm, 1) out/acc tiny)


def _round_up(v, m):
    return -(-v // m) * m


def _linreg_kernel(x_ref, w_ref, b_ref, o_ref, acc_ref, *, d_total):
    # x_ref: (tm, tk) VMEM   w_ref: (1, tk) VMEM   b_ref: (1,) SMEM
    # o_ref: (tm, 1) VMEM    acc_ref: (tm, 1) f32 VMEM (resident across K axis)
    k = pl.program_id(1)
    tm, tk = x_ref.shape

    @pl.when(k == 0)
    def _():
        acc_ref[...] = jnp.zeros_like(acc_ref)

    # f32 accumulation even if x/weight are supplied as bf16 in HBM.
    x = x_ref[...].astype(jnp.float32)
    w = w_ref[...].astype(jnp.float32)

    # Only the (rare) wide-D split path can have a padded last K block; zero
    # both operands there so unspecified padding (possibly NaN) never reaches
    # the accumulator. Each output row depends only on its own x row, so
    # padded *rows* of a partial last M tile are harmless (Pallas discards
    # the out-of-range output rows on writeback).
    if d_total % tk != 0:
        cols = k * tk + lax.broadcasted_iota(jnp.int32, (1, tk), 1)
        valid = cols < d_total
        x = jnp.where(valid, x, 0.0)
        w = jnp.where(valid, w, 0.0)

    # Lane-aligned chunked multiply-accumulate on the VPU (static 128-wide
    # slices are free vreg picks), then one cross-lane reduce on the XLU.
    if tk % _LANES == 0 and tk > _LANES:
        part = x[:, :_LANES] * w[:, :_LANES]
        for c in range(1, tk // _LANES):
            lo = c * _LANES
            part = part + x[:, lo:lo + _LANES] * w[:, lo:lo + _LANES]
        row_sum = jnp.sum(part, axis=-1, keepdims=True)
    else:
        row_sum = jnp.sum(x * w, axis=-1, keepdims=True)

    acc_ref[...] += row_sum

    @pl.when(k == pl.num_programs(1) - 1)
    def _():
        # TODO(synk): a lane-dense (1, tm) output slab would remove the masked
        # vst here; output traffic is <= 1/D of x traffic, so it is secondary.
        o_ref[...] = (acc_ref[...] + b_ref[0]).astype(o_ref.dtype)


def _pick_tiles(batch, input_dim, itemsize):
    """Byte-targeted (tm, tk) tile selection."""
    # D axis: keep the whole row unless it is very wide; then split into
    # 128-aligned tiles (bounds per-step VMEM and the in-kernel unroll).
    tk = input_dim if input_dim <= _MAX_TK else _MAX_TK

    # M axis: target ~_TARGET_TILE_BYTES of x per grid step, multiple of 8,
    # clamped to [8, batch].
    row_bytes = tk * itemsize
    tm = (_TARGET_TILE_BYTES // row_bytes) // _SUBLANES * _SUBLANES
    tm = max(_SUBLANES, min(tm, _MAX_TM, _round_up(batch, _SUBLANES)))

    if batch < 16:
        # Micro problem: single grid step; extra steps are pure overhead.
        tm = batch
    elif pl.cdiv(batch, tm) == 1:
        # >= 2 parallel grid steps so both v7x TensorCores stream
        # (negligible cost on single-TC v5e / v6e).
        tm = max(_SUBLANES, _round_up(pl.cdiv(batch, 2), _SUBLANES))
    return tm, tk


def regression_linear(x, weight, bias, *, tm=None, tk=None):
    """Pallas forward of nn.Linear(input_dim, 1, bias=True).

    x:      (B, D) float32 (or bf16; accumulation stays f32 in-kernel)
    weight: (1, D) PyTorch layout (out_features x in_features)
    bias:   (1,)
    returns (B, 1) in x.dtype
    """
    B, D = x.shape
    itemsize = jnp.dtype(x.dtype).itemsize
    auto_tm, auto_tk = _pick_tiles(B, D, itemsize)
    tm = auto_tm if tm is None else tm
    tk = auto_tk if tk is None else tk
    assert tm == B or tm % _SUBLANES == 0, "row tile must be a multiple of 8 (or == B)"
    assert tk == D or tk % _LANES == 0, "D tile must be a multiple of 128 (or == D)"

    grid = (pl.cdiv(B, tm), pl.cdiv(D, tk))
    kernel = functools.partial(_linreg_kernel, d_total=D)

    return pl.pallas_call(
        kernel,
        out_shape=jax.ShapeDtypeStruct((B, 1), x.dtype),
        grid_spec=pltpu.PrefetchScalarGridSpec(
            num_scalar_prefetch=0,
            grid=grid,
            in_specs=[
                pl.BlockSpec((tm, tk), lambda i, k: (i, k)),          # stream x rows
                pl.BlockSpec((1, tk), lambda i, k: (0, k)),           # weight (resident when tk == D)
                pl.BlockSpec(memory_space=pltpu.MemorySpace.SMEM),    # bias scalar
            ],
            out_specs=pl.BlockSpec((tm, 1), lambda i, k: (i, 0)),
            scratch_shapes=[pltpu.VMEM((tm, 1), jnp.float32)],
        ),
        compiler_params=pltpu.CompilerParams(
            dimension_semantics=("parallel", "arbitrary")),
        cost_estimate=pl.CostEstimate(
            flops=2 * B * D,
            transcendentals=0,
            bytes_accessed=B * D * itemsize + D * itemsize + B * itemsize),
    )(x, weight, bias)


def _check(key, batch, input_dim):
    kx, kw, kb = jax.random.split(key, 3)
    bound = 1.0 / jnp.sqrt(jnp.float32(input_dim))
    weight = jax.random.uniform(kw, (1, input_dim), jnp.float32, -bound, bound)
    bias = jax.random.uniform(kb, (1,), jnp.float32, -bound, bound)
    x = jax.random.normal(kx, (batch, input_dim), jnp.float32)

    out = jax.block_until_ready(regression_linear(x, weight, bias))
    ref = x @ weight.T + bias
    assert out.shape == (batch, 1)
    assert jnp.allclose(out, ref, atol=1e-4, rtol=1e-4), (batch, input_dim)


if __name__ == "__main__":
    key = jax.random.PRNGKey(0)
    k0, k1, k2 = jax.random.split(key, 3)

    # Primary small demo shape (matches the module's forward: x is (batch, input_dim)).
    _check(k0, batch=8, input_dim=32)
    # Exercise the multi-step grid + chunked MAC path (D multiple of 128).
    _check(k1, batch=300, input_dim=256)
    # Exercise a non-128-aligned D with a partial last row tile.
    _check(k2, batch=64, input_dim=200)

    print("KERNEL_OK")
</pallas_src>

<mosaic_0001>
module attributes {stable_mosaic.version = 11 : i64} {
  func.func @_linreg_kernel(%arg0: i32, %arg1: i32, %arg2: memref<8x32xf32, #tpu.memory_space<vmem>>, %arg3: memref<1x32xf32, #tpu.memory_space<vmem>>, %arg4: memref<1xf32, #tpu.memory_space<smem>>, %arg5: memref<8x1xf32, #tpu.memory_space<vmem>>, %arg6: memref<8x1xf32, #tpu.memory_space<vmem>>) attributes {dimension_semantics = [#tpu.dimension_semantics<parallel>, #tpu.dimension_semantics<arbitrary>], iteration_bounds = array<i64: 1, 1>, scalar_prefetch = 0 : i64, scratch_operands = 1 : i64, tpu.core_type = #tpu.core_type<tc>, window_params = [{transform_indices = @transform_0, window_bounds = array<i64: 8, 32>}, {transform_indices = @transform_1, window_bounds = array<i64: 1, 32>}, {transform_indices = @transform_2, window_bounds = array<i64: 1>}, {transform_indices = @transform_3, window_bounds = array<i64: 8, 1>}]} {
    %c0_i32 = arith.constant 0 : i32
    %0 = arith.cmpi eq, %arg1, %c0_i32 : i32
    %1 = arith.extui %0 : i1 to i32
    %c0_i32_0 = arith.constant 0 : i32
    %2 = arith.cmpi ne, %1, %c0_i32_0 : i32
    scf.if %2 {
      %cst_10 = arith.constant 0.000000e+00 : f32
      %15 = vector.broadcast %cst_10 : f32 to vector<8x1xf32>
      %c0_11 = arith.constant 0 : index
      %c0_12 = arith.constant 0 : index
      %16 = vector.load %arg6[%c0_11, %c0_12] : memref<8x1xf32, #tpu.memory_space<vmem>>, vector<8x1xf32>
      tpu.vector_store %arg6[%c0_11, %c0_12], %15 {strides = array<i32>} : memref<8x1xf32, #tpu.memory_space<vmem>>, vector<8x1xf32>,
    } else {
    }
    %c0 = arith.constant 0 : index
    %c0_1 = arith.constant 0 : index
    %3 = vector.load %arg2[%c0, %c0_1] : memref<8x32xf32, #tpu.memory_space<vmem>>, vector<8x32xf32>
    %c0_2 = arith.constant 0 : index
    %c0_3 = arith.constant 0 : index
    %4 = vector.load %arg3[%c0_2, %c0_3] : memref<1x32xf32, #tpu.memory_space<vmem>>, vector<1x32xf32>
    %5 = vector.broadcast %4 : vector<1x32xf32> to vector<8x32xf32>
    %6 = arith.mulf %3, %5 : vector<8x32xf32>
    %cst = arith.constant dense<0.000000e+00> : vector<8xf32>
    %7 = vector.multi_reduction <add>, %6, %cst [1] : vector<8x32xf32> to vector<8xf32>
    %8 = vector.shape_cast %7 : vector<8xf32> to vector<8x1xf32>
    %c0_4 = arith.constant 0 : index
    %c0_5 = arith.constant 0 : index
    %9 = vector.load %arg6[%c0_4, %c0_5] : memref<8x1xf32, #tpu.memory_space<vmem>>, vector<8x1xf32>
    %10 = arith.addf %9, %8 : vector<8x1xf32>
    %c0_6 = arith.constant 0 : index
    %c0_7 = arith.constant 0 : index
    %11 = vector.load %arg6[%c0_6, %c0_7] : memref<8x1xf32, #tpu.memory_space<vmem>>, vector<8x1xf32>
    tpu.vector_store %arg6[%c0_6, %c0_7], %10 {strides = array<i32>} : memref<8x1xf32, #tpu.memory_space<vmem>>, vector<8x1xf32>,
    %c0_i32_8 = arith.constant 0 : i32
    %12 = arith.cmpi eq, %arg1, %c0_i32_8 : i32
    %13 = arith.extui %12 : i1 to i32
    %c0_i32_9 = arith.constant 0 : i32
    %14 = arith.cmpi ne, %13, %c0_i32_9 : i32
    scf.if %14 {
      %c0_10 = arith.constant 0 : index
      %c0_11 = arith.constant 0 : index
      %15 = vector.load %arg6[%c0_10, %c0_11] : memref<8x1xf32, #tpu.memory_space<vmem>>, vector<8x1xf32>
      %c0_12 = arith.constant 0 : index
      %16 = memref.load %arg4[%c0_12] : memref<1xf32, #tpu.memory_space<smem>>
      %17 = vector.broadcast %16 : f32 to vector<8x1xf32>
      %18 = arith.addf %15, %17 : vector<8x1xf32>
      %c0_13 = arith.constant 0 : index
      %c0_14 = arith.constant 0 : index
      %19 = vector.load %arg5[%c0_13, %c0_14] : memref<8x1xf32, #tpu.memory_space<vmem>>, vector<8x1xf32>
      tpu.vector_store %arg5[%c0_13, %c0_14], %18 {strides = array<i32>} : memref<8x1xf32, #tpu.memory_space<vmem>>, vector<8x1xf32>,
    } else {
    }
    return
  }
  func.func @transform_0(%arg0: i32, %arg1: i32) -> (i32, i32) {
    %c0_i32 = arith.constant 0 : i32
    return %arg0, %arg1 : i32, i32
  }
  func.func @transform_1(%arg0: i32, %arg1: i32) -> (i32, i32) {
    %c0_i32 = arith.constant 0 : i32
    %c0_i32_0 = arith.constant 0 : i32
    return %c0_i32, %arg1 : i32, i32
  }
  func.func @transform_2(%arg0: i32, %arg1: i32) -> i32 {
    %c0_i32 = arith.constant 0 : i32
    %c0_i32_0 = arith.constant 0 : i32
    return %c0_i32 : i32
  }
  func.func @transform_3(%arg0: i32, %arg1: i32) -> (i32, i32) {
    %c0_i32 = arith.constant 0 : i32
    %c0_i32_0 = arith.constant 0 : i32
    return %arg0, %c0_i32 : i32, i32
  }
}

</mosaic_0001>

<llo_original>
// kernel: tpu_custom_call.1
$region0: #{tpu_custom_call.1}
  #allocation0 [shape = 'u32[]', space=smem, size = 0x4, offset = 0x4, fixed_abs, tag = 'smem constant byte address 0x4 - core index']
  #allocation1 [shape = 'u32[72,128]{1,0:T(1,128)}', space=vmem, size = 0x9000, scoped, tag = 'internal scratch']
  #allocation2 [shape = 'f32[8,1]{1,0:T(8,128)}', space=vmem, size = 0x1000, scoped, tag = 'scratch operand']
  #allocation3 [shape = 'f32[1]{0:T(128)S(6)}', space=smem, size = 0x200, scoped, tag = 'scoped memory for tpu_custom_call.1']
  %s0 = inlined_call_operand.hbm [shape: f32[8,32], index: 0, kind: input, shape index: {}]
  %s1 = inlined_call_operand.vmem [shape: f32[1,32], index: 1, kind: input, shape index: {}]
  %s2 = inlined_call_operand.<no memory space> [shape: f32[1], index: 2, kind: input, shape index: {}]
  %s3 = inlined_call_operand.vmem [shape: f32[8,1], index: 3, kind: output, shape index: {}]
  %s4 = sld [smem:[#allocation0]]
  $region34: #{tpu_custom_call.1} parent=0
    _
  %s6 = ssub.s32 1, %s4
  %s7 = scalar_select 0, %s6, %s4
  %8 = sst [smem:[#allocation3]] %s2
  $region1: #{tpu_custom_call.1} parent=0
    #allocation4 [shape = 'u8[4096]{0}', space=vmem, size = 0x1000, scoped, tag = 'input window, operand 0, single buffered']
    #allocation5 [shape = 's32[1]{0}', space=sflag, size = 0x4, scoped, tag = 'scoped memory for tpu_custom_call.1']
    %9 = vsyncpa [#allocation5], 0
    // Predicated region
    $region2: #{tpu_custom_call.1} parent=1 // pred_check
      _
    $region3: #{tpu_custom_call.1} parent=1 // pred_check_branch
      %11 = sbr.rel (0) target = $region5
    $region4: #{tpu_custom_call.1} parent=1 // pred_region
      %13 = vsyncadd [#allocation5], 0
      %s15 = sshll.u32 %s0, 4
      %s16 = int_to_ptr.hbm [resolvable:$true] %s15
      %s17 = sshll.u32 [#allocation4], 4
      %s18 = int_to_ptr.vmem [resolvable:$true] %s17
      %20 = dma.hbm_to_vmem [thread:$0]  %s16, 128, %s18, [#allocation5]
    $region5: #{tpu_custom_call.1} parent=1 // pred_fallthru
      _
    // Predicated region
    $region6: #{tpu_custom_call.1} parent=1 // pred_check
      _
    $region7: #{tpu_custom_call.1} parent=1 // pred_check_branch
      %22 = sbr.rel (0) target = $region9
    $region8: #{tpu_custom_call.1} parent=1 // pred_region
      _
    $region9: #{tpu_custom_call.1} parent=1 // pred_fallthru
      _
    // Predicated region
    $region10: #{tpu_custom_call.1} parent=1 // pred_check
      _
    $region11: #{tpu_custom_call.1} parent=1 // pred_check_branch
      %24 = sbr.rel (0) target = $region13
    $region12: #{tpu_custom_call.1} parent=1 // pred_region
      _
    $region13: #{tpu_custom_call.1} parent=1 // pred_fallthru
      _
    // Predicated region
    $region14: #{tpu_custom_call.1} parent=1 // pred_check
      _
    $region15: #{tpu_custom_call.1} parent=1 // pred_check_branch
      %26 = sbr.rel (0) target = $region17
    $region16: #{tpu_custom_call.1} parent=1 // pred_region
      %28 = dma.done [#allocation5], 128
    $region17: #{tpu_custom_call.1} parent=1 // pred_fallthru
      _
    %p29 = scmp.eq.s32.totalorder 0, 0
    // Predicated region
    $region18: #{tpu_custom_call.1} parent=1 // pred_check
      %p30 = pneg %p29
    $region19: #{tpu_custom_call.1} parent=1 // pred_check_branch
      %32 = sbr.rel (%p30) target = $region21
    $region20: #{tpu_custom_call.1} parent=1 // pred_region
      %vm33 = vcmask 7168
      %34 = vst.msk [vmem:[#allocation2] sm:$0xff] %vm33, 0.0
    $region21: #{tpu_custom_call.1} parent=1 // pred_fallthru
      _
    %v35 = vld [vmem:[#allocation4] sm:$0xff]
    %v36 = vld [vmem:[%s1] sm:$0x1]
    %v38 = vperm.slane %v36, 0
    %v40 = vmul.f32 %v35, %v38
    %vm41 = vcmask 261120
    %v42 = vsel %vm41, %v40, 0.0
    %43 = vadd.xlane.f32.xlu0 %v42
    %v44 = vpop.xlane.xlu0 %43
    %v45 = vld [vmem:[#allocation2] sm:$0xff]
    %v46 = vadd.f32 %v45, %v44
    %vm47 = vcmask 7168
    %48 = vst.msk [vmem:[#allocation2] sm:$0xff] %vm47, %v46
    // Predicated region
    $region22: #{tpu_custom_call.1} parent=1 // pred_check
      %p49 = pneg %p29
    $region23: #{tpu_custom_call.1} parent=1 // pred_check_branch
      %51 = sbr.rel (%p49) target = $region25
    $region24: #{tpu_custom_call.1} parent=1 // pred_region
      %v52 = vld [vmem:[#allocation2] sm:$0xff]
      %s53 = sld [smem:[#allocation3]]
      %v54 = vstv %s53
      %v55 = vadd.f32 %v52, %v54
      %56 = vst.msk [vmem:[%s3] sm:$0xff] %vm47, %v55
    $region25: #{tpu_custom_call.1} parent=1 // pred_fallthru
      _
    // Predicated region
    $region26: #{tpu_custom_call.1} parent=1 // pred_check
      _
    $region27: #{tpu_custom_call.1} parent=1 // pred_check_branch
      %58 = sbr.rel (0) target = $region29
    $region28: #{tpu_custom_call.1} parent=1 // pred_region
      _
    $region29: #{tpu_custom_call.1} parent=1 // pred_fallthru
      _
    // Predicated region
    $region30: #{tpu_custom_call.1} parent=1 // pred_check
      _
    $region31: #{tpu_custom_call.1} parent=1 // pred_check_branch
      %60 = sbr.rel (0) target = $region33
    $region32: #{tpu_custom_call.1} parent=1 // pred_region
      _
    $region33: #{tpu_custom_call.1} parent=1 // pred_fallthru
      _
    %61 = vsyncpa [#allocation5], 1

</llo_original>
